<compile_context>
chip_gen: v6e
topology: v6e:2x2x1
jax: 0.10.0
libtpu: 0.0.40
codegen_flags: <defaults>
</compile_context>

<pallas_src>
import functools

import jax
import jax.numpy as jnp
from jax import lax
from jax.experimental import pallas as pl
from jax.experimental.pallas import tpu as pltpu


# ---------------------------------------------------------------------------
# Prologue: xc = cos(x) + y, computed once.
# ---------------------------------------------------------------------------
def _xc_kernel(x_ref, y_ref, o_ref):
    o_ref[...] = jnp.cos(x_ref[...]) + y_ref[...]


def _compute_xc(x, y):
    n0, n1 = x.shape
    # Row tile: multiple of 8 dividing n0, block <= ~2 MiB; otherwise the
    # full array (allowed by the (8,128) rule when equal to the array dims).
    tr = n0
    for cand in (512, 256, 128, 64, 32, 16, 8):
        if n0 % cand == 0 and cand * n1 * 4 <= (2 << 20):
            tr = cand
            break
    return pl.pallas_call(
        _xc_kernel,
        out_shape=jax.ShapeDtypeStruct((n0, n1), x.dtype),
        grid=(n0 // tr,),
        in_specs=[pl.BlockSpec((tr, n1), lambda i: (i, 0)),
                  pl.BlockSpec((tr, n1), lambda i: (i, 0))],
        out_specs=pl.BlockSpec((tr, n1), lambda i: (i, 0)),
        compiler_params=pltpu.CompilerParams(
            dimension_semantics=("parallel",)),
        cost_estimate=pl.CostEstimate(
            flops=n0 * n1,
            transcendentals=n0 * n1,
            bytes_accessed=3 * n0 * n1 * 4),
    )(x, y)


# ---------------------------------------------------------------------------
# Main kernel: out = sin(where(p1, xc + where(p2, 4, 1) * (xc@xc), xc@xc))
# ---------------------------------------------------------------------------
def _mm_kernel(pred_ref,            # SMEM int32[2] -> [pred1, pred2]
               lhs_ref,             # (tm, tk) xc tile at (i, k)
               rhs_ref,             # (tk, tn) xc tile at (k, j)
               fin_ref,             # (tm, tn) xc tile at (i, j) for "x + z"
               out_ref):            # (tm, tn) f32 output tile (accumulator)
    k = pl.program_id(2)

    @pl.when(k == 0)
    def _init():
        out_ref[...] = jnp.zeros_like(out_ref)

    # One matmul serves every predicate path: (xc+xc)@(xc+xc) == 4*(xc@xc)
    # exactly (power-of-two scaling), so pred2 becomes a scalar scale.
    out_ref[...] += jnp.dot(lhs_ref[...], rhs_ref[...],
                            preferred_element_type=jnp.float32,
                            precision=lax.Precision.HIGHEST)

    @pl.when(k == pl.num_programs(2) - 1)
    def _finalize():
        p1 = pred_ref[0] != 0
        p2 = pred_ref[1] != 0
        m = out_ref[...]                                   # xc @ xc
        scale = jnp.where(p2, jnp.float32(4.0), jnp.float32(1.0))
        res = jnp.where(p1, fin_ref[...] + scale * m, m)
        out_ref[...] = jnp.sin(res).astype(out_ref.dtype)


def _choose_tiles(n):
    """Pick (tm, tn, tk) for padded size n (a multiple of 128)."""
    def largest():
        for cand in (512, 256, 128):
            if n % cand == 0:
                return cand
        return n

    tn = largest()
    tk = largest()
    tm = largest()
    # Keep the i grid extent >= 2 when possible so v7x's two TensorCores both
    # get work along the leading "parallel" axis.
    if n // tm < 2:
        for cand in (256, 128):
            if n % cand == 0 and n // cand >= 2:
                tm = cand
                break
    return tm, tn, tk


def m_forward(x, pred1, pred2, y):
    """Pallas forward for M.  x, y: (N, N) float32; pred1/pred2: (1,) bools."""
    assert x.ndim == 2 and x.shape == y.shape and x.shape[0] == x.shape[1], \
        "x @ x requires square inputs"
    assert x.dtype == jnp.float32, "kernel accumulates in the f32 output block"
    n = x.shape[0]

    # Step 1: xc = cos(x) + y, once.
    xc = _compute_xc(x, y)

    # Step 2: zero-pad to a multiple of 128 (exact for the matmul; padded
    # region is sliced off) so we never allocate full-array operand blocks.
    n_pad = max(128, ((n + 127) // 128) * 128)
    if n_pad != n:
        xc = jnp.pad(xc, ((0, n_pad - n), (0, n_pad - n)))

    tm, tn, tk = _choose_tiles(n_pad)
    gm, gn, gk = n_pad // tm, n_pad // tn, n_pad // tk

    preds = jnp.concatenate(
        [pred1.reshape(-1).astype(jnp.int32),
         pred2.reshape(-1).astype(jnp.int32)])      # int32[2] -> SMEM prefetch

    grid_spec = pltpu.PrefetchScalarGridSpec(
        num_scalar_prefetch=1,
        grid=(gm, gn, gk),                          # reduction axis last
        in_specs=[
            pl.BlockSpec((tm, tk), lambda i, j, k, p: (i, k)),   # lhs
            pl.BlockSpec((tk, tn), lambda i, j, k, p: (k, j)),   # rhs
            pl.BlockSpec((tm, tn), lambda i, j, k, p: (i, j)),   # finalize xc
        ],
        out_specs=pl.BlockSpec((tm, tn), lambda i, j, k, p: (i, j)),
    )

    # Double-buffered VMEM footprint: lhs + rhs + fin + out streams (f32).
    vmem_need = 4 * 2 * (tm * tk + tk * tn + 2 * tm * tn)
    vmem_limit = min(vmem_need + (8 << 20), 48 << 20)

    cost = pl.CostEstimate(
        flops=2 * n_pad ** 3 + 4 * n_pad ** 2,
        transcendentals=n_pad ** 2,                             # sin
        # lhs read gn times, rhs read gm times, fin read once, out written once
        bytes_accessed=(gn + gm + 2) * n_pad * n_pad * 4,
    )

    out = pl.pallas_call(
        _mm_kernel,
        out_shape=jax.ShapeDtypeStruct((n_pad, n_pad), x.dtype),
        grid_spec=grid_spec,
        compiler_params=pltpu.CompilerParams(
            dimension_semantics=("parallel", "parallel", "arbitrary"),
            vmem_limit_bytes=vmem_limit,
        ),
        cost_estimate=cost,
    )(preds, xc, xc, xc)

    return out[:n, :n] if n_pad != n else out


def m_forward_ref(x, pred1, pred2, y):
    """Pure-JAX reference (preds resolved as Python bools)."""
    xc = jnp.cos(x) + y
    mm = functools.partial(jnp.matmul, precision=lax.Precision.HIGHEST)
    if bool(pred1[0]):
        if bool(pred2[0]):
            xx = xc + xc
            z = mm(xx, xx)
        else:
            z = mm(xc, xc)
        out = xc + z
    else:
        out = mm(xc, xc)
    return jnp.sin(out)


if __name__ == "__main__":
    ok = True
    # 2: module's example scale (full-array blocks in the prologue, padded to
    #    one 128 tile); 200: exercises the padding path; 1024: 512-tile grid
    #    (2,2,2) exercises multi-step k accumulation and both parallel axes.
    for n in (2, 200, 1024):
        key = jax.random.PRNGKey(0)
        kx, ky = jax.random.split(key)
        x = jax.random.normal(kx, (n, n), dtype=jnp.float32) * 0.1
        # y chosen so xc = cos(x) + y stays small -> matmul and sin stay
        # well-conditioned for a tight tolerance check.
        y = -jnp.cos(x) + jax.random.normal(ky, (n, n), dtype=jnp.float32) * 0.01

        for p1 in (False, True):
            for p2 in (False, True):
                pred1 = jnp.array([p1])
                pred2 = jnp.array([p2])
                out = jax.block_until_ready(m_forward(x, pred1, pred2, y))
                ref = m_forward_ref(x, pred1, pred2, y)
                if not bool(jnp.allclose(out, ref, rtol=1e-4, atol=1e-4)):
                    ok = False
                    print(f"MISMATCH n={n} pred1={p1} pred2={p2} "
                          f"max_err={float(jnp.max(jnp.abs(out - ref)))}")

    if ok:
        print("KERNEL_OK")
</pallas_src>

<mosaic_0001>
module attributes {stable_mosaic.version = 11 : i64} {
  func.func @_xc_kernel(%arg0: i32, %arg1: memref<2x2xf32, #tpu.memory_space<vmem>>, %arg2: memref<2x2xf32, #tpu.memory_space<vmem>>, %arg3: memref<2x2xf32, #tpu.memory_space<vmem>>) attributes {dimension_semantics = [#tpu.dimension_semantics<parallel>], iteration_bounds = array<i64: 1>, scalar_prefetch = 0 : i64, scratch_operands = 0 : i64, tpu.core_type = #tpu.core_type<tc>, window_params = [{transform_indices = @transform_0, window_bounds = array<i64: 2, 2>}, {transform_indices = @transform_1, window_bounds = array<i64: 2, 2>}, {transform_indices = @transform_2, window_bounds = array<i64: 2, 2>}]} {
    %c0 = arith.constant 0 : index
    %c0_0 = arith.constant 0 : index
    %0 = vector.load %arg1[%c0, %c0_0] : memref<2x2xf32, #tpu.memory_space<vmem>>, vector<2x2xf32>
    %1 = math.cos %0 : vector<2x2xf32>
    %c0_1 = arith.constant 0 : index
    %c0_2 = arith.constant 0 : index
    %2 = vector.load %arg2[%c0_1, %c0_2] : memref<2x2xf32, #tpu.memory_space<vmem>>, vector<2x2xf32>
    %3 = arith.addf %1, %2 : vector<2x2xf32>
    %c0_3 = arith.constant 0 : index
    %c0_4 = arith.constant 0 : index
    %4 = vector.load %arg3[%c0_3, %c0_4] : memref<2x2xf32, #tpu.memory_space<vmem>>, vector<2x2xf32>
    tpu.vector_store %arg3[%c0_3, %c0_4], %3 {strides = array<i32>} : memref<2x2xf32, #tpu.memory_space<vmem>>, vector<2x2xf32>,
    return
  }
  func.func @transform_0(%arg0: i32) -> (i32, i32) {
    %c0_i32 = arith.constant 0 : i32
    %c0_i32_0 = arith.constant 0 : i32
    return %arg0, %c0_i32 : i32, i32
  }
  func.func @transform_1(%arg0: i32) -> (i32, i32) {
    %c0_i32 = arith.constant 0 : i32
    %c0_i32_0 = arith.constant 0 : i32
    return %arg0, %c0_i32 : i32, i32
  }
  func.func @transform_2(%arg0: i32) -> (i32, i32) {
    %c0_i32 = arith.constant 0 : i32
    %c0_i32_0 = arith.constant 0 : i32
    return %arg0, %c0_i32 : i32, i32
  }
}

</mosaic_0001>

<llo_original>
// kernel: tpu_custom_call.1
$region0: #{tpu_custom_call.1}
  #allocation0 [shape = 'u32[]', space=smem, size = 0x4, offset = 0x4, fixed_abs, tag = 'smem constant byte address 0x4 - core index']
  #allocation1 [shape = 'u32[144,128]{1,0:T(1,128)}', space=vmem, size = 0x12000, scoped, tag = 'internal scratch']
  %s0 = inlined_call_operand.hbm [shape: f32[2,2], index: 0, kind: input, shape index: {}]
  %s1 = inlined_call_operand.hbm [shape: f32[2,2], index: 1, kind: input, shape index: {}]
  %s2 = inlined_call_operand.hbm [shape: f32[2,2], index: 2, kind: output, shape index: {}]
  %s3 = sld [smem:[#allocation0]]
  $region26: #{tpu_custom_call.1} parent=0
    _
  %s5 = ssub.s32 1, %s3
  %s6 = scalar_select 0, %s5, %s3
  $region1: #{tpu_custom_call.1} parent=0
    #allocation2 [shape = 'u8[1024]{0}', space=vmem, size = 0x400, scoped, tag = 'input window, operand 0, single buffered']
    #allocation3 [shape = 's32[1]{0}', space=sflag, size = 0x4, scoped, tag = 'scoped memory for tpu_custom_call.1']
    #allocation4 [shape = 's32[1]{0}', space=sflag, size = 0x4, scoped, tag = 'scoped memory for tpu_custom_call.1']
    #allocation5 [shape = 'u8[1024]{0}', space=vmem, size = 0x400, scoped, tag = 'input window, operand 1, single buffered']
    #allocation6 [shape = 's32[1]{0}', space=sflag, size = 0x4, scoped, tag = 'scoped memory for tpu_custom_call.1']
    #allocation7 [shape = 'u8[1024]{0}', space=vmem, size = 0x400, scoped, tag = 'output window, operand 0, single buffered']
    %7 = vsyncpa [#allocation3], 0
    %8 = vsyncpa [#allocation6], 0
    %9 = vsyncpa [#allocation4], 0
    // Predicated region
    $region2: #{tpu_custom_call.1} parent=1 // pred_check
      _
    $region3: #{tpu_custom_call.1} parent=1 // pred_check_branch
      %11 = sbr.rel (0) target = $region5
    $region4: #{tpu_custom_call.1} parent=1 // pred_region
      %s13 = ssub.s32 32, 32
      %14 = vsyncadd [#allocation3], %s13
      %s16 = sshll.u32 [#allocation2], 4
      %s17 = int_to_ptr.vmem [resolvable:$true] %s16
      %19 = dma.hbm_to_vmem [thread:$0]  %s0, 32, %s17, [#allocation3]
    $region5: #{tpu_custom_call.1} parent=1 // pred_fallthru
      _
    // Predicated region
    $region6: #{tpu_custom_call.1} parent=1 // pred_check
      _
    $region7: #{tpu_custom_call.1} parent=1 // pred_check_branch
      %21 = sbr.rel (0) target = $region9
    $region8: #{tpu_custom_call.1} parent=1 // pred_region
      %s23 = ssub.s32 32, 32
      %24 = vsyncadd [#allocation6], %s23
      %s26 = sshll.u32 [#allocation5], 4
      %s27 = int_to_ptr.vmem [resolvable:$true] %s26
      %29 = dma.hbm_to_vmem [thread:$0]  %s1, 32, %s27, [#allocation6]
    $region9: #{tpu_custom_call.1} parent=1 // pred_fallthru
      _
    // Predicated region
    $region10: #{tpu_custom_call.1} parent=1 // pred_check
      _
    $region11: #{tpu_custom_call.1} parent=1 // pred_check_branch
      %31 = sbr.rel (0) target = $region13
    $region12: #{tpu_custom_call.1} parent=1 // pred_region
      %32 = dma.done [#allocation3], 32
    $region13: #{tpu_custom_call.1} parent=1 // pred_fallthru
      _
    // Predicated region
    $region14: #{tpu_custom_call.1} parent=1 // pred_check
      _
    $region15: #{tpu_custom_call.1} parent=1 // pred_check_branch
      %34 = sbr.rel (0) target = $region17
    $region16: #{tpu_custom_call.1} parent=1 // pred_region
      %35 = dma.done [#allocation6], 32
    $region17: #{tpu_custom_call.1} parent=1 // pred_fallthru
      _
    %v36 = vld [vmem:[#allocation2] sm:$0x3]
    %v37 = vand.u32 2147483647, %v36
    %vm38 = vcmp.le.f32.partialorder %v37, 0.7853982
    %vm39 = vcmp.lt.s32.totalorder %v36, 0
    %v40 = vand.u32 %v36, 2139095040
    %v41 = vshrl.u32 %v40, 23
    %v42 = vsub.s32 %v41, 127
    %v43 = vand.u32 2147483647, %v36
    %v44 = vand.u32 %v43, 8388607
    %v45 = vor.u32 %v44, 8388608
    %v46 = vsub.s32 0, %v45
    %v47 = vadd.s32 %v42, 1
    %vm48 = vcmp.gt.s32.totalorder %v47, 0
    %v49 = vsel %vm48, %v47, 0
    %v50 = vshrl.u32 %v49, 5
    %v51 = vand.u32 %v49, 31
    %v52 = vsub.s32 32, %v51
    %v53 = vshrl.u32 683565275, %v52
    %v54 = vshll.u32 683565275, %v51
    %v55 = vshrl.u32 2475754826, %v52
    %v56 = vor.u32 %v54, %v55
    %v57 = vshll.u32 2475754826, %v51
    %v58 = vshrl.u32 2131351028, %v52
    %v59 = vor.u32 %v57, %v58
    %v60 = vshll.u32 2131351028, %v51
    %v61 = vshrl.u32 2102212464, %v52
    %v62 = vor.u32 %v60, %v61
    %v63 = vshll.u32 2102212464, %v51
    %v64 = vshrl.u32 920167782, %v52
    %v65 = vor.u32 %v63, %v64
    %v66 = vshll.u32 920167782, %v51
    %v67 = vshrl.u32 1326507024, %v52
    %v68 = vor.u32 %v66, %v67
    %vm69 = vcmp.lt.s32.totalorder %v50, 1
    %vm70 = vcmp.lt.s32.totalorder %v50, 2
    %vm71 = vcmp.lt.s32.totalorder %v50, 3
    %vm72 = vcmp.lt.s32.totalorder %v50, 4
    %v73 = vsel %vm69, %v53, %v56
    %v74 = vsel %vm72, %v62, 2102212464
    %v75 = vsel %vm71, %v59, %v74
    %v76 = vsel %vm70, %v73, %v75
    %v77 = vsel %vm69, %v56, %v59
    %v78 = vsel %vm72, %v65, 920167782
    %v79 = vsel %vm71, %v62, %v78
    %v80 = vsel %vm70, %v77, %v79
    %v81 = vsel %vm69, %v59, %v62
    %v82 = vsel %vm72, %v68, 1326507024
    %v83 = vsel %vm71, %v65, %v82
    %v84 = vsel %vm70, %v81, %v83
    %v85 = vshll.u32 %v45, 8
    %v86 = vmul.u32.u64.compose %v85, %v84
    %v87 = vextract.low.u32 %v86
    %v88 = vextract.high.u32 %v86
    %v89 = vmul.u32.u64.compose %v85, %v80
    %v90 = vextract.low.u32 %v89
    %v91 = vextract.high.u32 %v89
    %v92 = vmul.u32 %v85, %v76
    %v93 = vadd.s32 %v88, %v90
    %vm94 = vc.u32 %v88, %v90
    %v95 = vadd.s32 %v91, 1
    %v96 = vsel %vm94, %v95, %v91
    %v97 = vadd.s32 %v92, %v96
    %v98 = vadd.s32 %v97, 536870912
    %v99 = vshrl.u32 %v98, 30
    %v100 = vshll.u32 %v99, 30
    %v101 = vsub.s32 %v97, %v100
    %vm102 = vcmp.lt.s32.totalorder %v101, 0
    %v103 = vsub.s32 0, %v101
    %v104 = vsel %vm102, %v103, %v101
    %v105 = vclz %v104
    %v106 = vsub.s32 %v105, 2
    %vm107 = vcmp.gt.s32.totalorder 0, %v106
    %v108 = vsel %vm107, 0, %v106
    %v109 = vsub.s32 32, %v108
    %v110 = vshll.u32 %v101, %v108
    %v111 = vshrl.u32 %v93, %v109
    %v112 = vor.u32 %v110, %v111
    %v113 = vsub.s32 4294967266, %v108
    %v114 = vadd.s32 %v113, 127
    %v115 = vshll.u32 %v114, 23
    %v116 = vor.u32 4788187, %v115
    %v117 = vand.u32 2147483647, %v116
    %v119 = vcvt.s32.f32 %v112
    %v120 = vmul.f32 %v119, %v117
    %v121 = vxor.u32 %v120, 2147483648
    %v122 = vsel %vm39, %v121, %v120
    %v123 = vsub.s32 4, %v99
    %v124 = vsel %vm39, %v123, %v99
    %v125 = vsel %vm38, %v36, %v122
    %v126 = vsel %vm38, 0, %v124
    %v127 = vcosq.f32.pop %v125
    %v128 = vsinq.f32.pop %v125
    %vm129 = vweird.f32 %v36
    %v130 = vand.u32 %v126, 3
    %vm131 = vcmp.lt.s32.totalorder %v130, 2
    %vm132 = vcmp.eq.s32.totalorder %v130, 0
    %v133 = vxor.u32 %v128, 2147483648
    %v134 = vsel %vm132, %v127, %v133
    %vm135 = vcmp.eq.s32.totalorder %v130, 2
    %v136 = vxor.u32 %v127, 2147483648
    %v137 = vsel %vm135, %v136, %v128
    %v138 = vsel %vm131, %v134, %v137
    %v139 = vsel %vm129, nan, %v138
    %v140 = vld [vmem:[#allocation5] sm:$0x3]
    %v141 = vadd.f32 %v139, %v140
    %vm142 = vcmask 9216
    %143 = vst.msk [vmem:[#allocation7] sm:$0x3] %vm142, %v141
    // Predicated region
    $region18: #{tpu_custom_call.1} parent=1 // pred_check
      _
    $region19: #{tpu_custom_call.1} parent=1 // pred_check_branch
      %145 = sbr.rel (0) target = $region21
    $region20: #{tpu_custom_call.1} parent=1 // pred_region
      %s147 = ssub.s32 32, 32
      %148 = vsyncadd [#allocation4], %s147
      %s150 = sshll.u32 [#allocation7], 4
      %s151 = int_to_ptr.vmem [resolvable:$true] %s150
      %153 = dma.vmem_to_hbm [thread:$0]  %s151, 32, %s2, [#allocation4]
    $region21: #{tpu_custom_call.1} parent=1 // pred_fallthru
      _
    // Predicated region
    $region22: #{tpu_custom_call.1} parent=1 // pred_check
      _
    $region23: #{tpu_custom_call.1} parent=1 // pred_check_branch
      %155 = sbr.rel (0) target = $region25
    $region24: #{tpu_custom_call.1} parent=1 // pred_region
      %156 = dma.done [#allocation4], 32
    $region25: #{tpu_custom_call.1} parent=1 // pred_fallthru
      _
    %157 = vsyncpa [#allocation3], 1
    %158 = vsyncpa [#allocation6], 1
    %159 = vsyncpa [#allocation4], 1

</llo_original>
